<compile_context>
chip_gen: v7x
topology: tpu7x:2x2x1
jax: 0.10.0
libtpu: 0.0.40
codegen_flags: <defaults>
</compile_context>

<pallas_src>
import functools

import jax
import jax.numpy as jnp
from jax.experimental import pallas as pl
from jax.experimental.pallas import tpu as pltpu


_LANE = 128
_LANE_CANDIDATES = (8192, 4096, 2048, 1024, 512, 256, 128)
# Minimum sublane (second-to-last) tile dim per element width (packing rule).
_MIN_SUBLANES = {4: 8, 2: 16, 1: 32}


def _apply_ref(x, kind):
    """Plain-jnp non-linearity (small-input bypass / ragged tail)."""
    if kind == "relu":
        return jnp.maximum(x, 0)
    if kind == "tanh":
        return jnp.tanh(x)
    raise ValueError("Non linear function {} is not supported".format(kind))


def _make_nonlin_kernel(kind):
    """Pallas kernel body applying the chosen non-linearity to one block."""
    if kind == "relu":
        def kernel(x_ref, o_ref):
            o_ref[...] = jnp.maximum(x_ref[...], 0)          # VPU
    else:  # tanh
        def kernel(x_ref, o_ref):
            o_ref[...] = jnp.tanh(x_ref[...])                # EUP
    return kernel


def _choose_lanes(n, min_sub):
    """Pick a lane width (multiple of 128) dividing n that keeps sublanes
    well occupied (rows >= min_sub, ideally a multiple of it)."""
    # Pass 1: rows is a nonzero multiple of min_sub -> fully packed vregs.
    for w in _LANE_CANDIDATES:
        if n % w == 0:
            rows = n // w
            if rows >= min_sub and rows % min_sub == 0:
                return w
    # Pass 2: at least min_sub rows (last sublane group may be partial).
    for w in _LANE_CANDIDATES:
        if n % w == 0 and n // w >= min_sub:
            return w
    # Pass 3: tiny inputs -- narrowest legal lane width maximizes occupancy.
    if n % _LANE == 0:
        return _LANE
    return None


def _choose_tile_rows(rows, min_sub, target_rows):
    """Block row count: VMEM-budget sized, >=2 (even) grid steps when rows
    allow (so megacore 'parallel' shards across both v7x TCs), preferring a
    divisor of rows so the final block is full (unmasked vst)."""
    if rows <= min_sub:
        return rows                           # single full-extent block (legal)
    max_tile = min(target_rows, rows)
    max_tile = max(min_sub, (max_tile // min_sub) * min_sub)
    # At least two grid steps when rows allow it (two TensorCores on v7x).
    min_steps = 2 if rows >= 2 * min_sub else 1
    steps = max(pl.cdiv(rows, max_tile), min_steps)
    if steps > 1 and steps % 2:
        steps += 1                            # even steps -> balanced TC split
    # Prefer a tile that divides rows exactly -> full final block.
    if rows % min_sub == 0:
        start = max(min_sub, (rows // steps) // min_sub * min_sub)
        stop = max(min_sub, start - 64 * min_sub)   # bounded trace-time search
        for cand in range(start, stop - 1, -min_sub):
            if cand <= max_tile and rows % cand == 0 and rows // cand >= min_steps:
                return cand
    # Fallback: even-ish split; Pallas masks the partial last block.
    t = pl.cdiv(pl.cdiv(rows, steps), min_sub) * min_sub
    return min(max(t, min_sub), max_tile)


def _nonlin_slab(x2, kind, min_sub, target_block_bytes, buffer_count):
    """Run the elementwise kernel over a (rows, lanes) slab."""
    rows, lanes = x2.shape
    itemsize = jnp.dtype(x2.dtype).itemsize
    bytes_per_row = lanes * itemsize
    target_rows = max(min_sub,
                      (target_block_bytes // bytes_per_row) // min_sub * min_sub)
    tile_rows = _choose_tile_rows(rows, min_sub, target_rows)
    grid = (pl.cdiv(rows, tile_rows),)

    # Explicit scoped-VMEM limit: in+out double (or triple) buffers of the
    # block must fit even on v5e's 16 MiB default.  Physical VMEM is >=64 MiB
    # on every generation, so 32-48 MiB is always safe.
    tile_bytes = tile_rows * lanes * itemsize
    vmem_limit = int(min(48 << 20,
                         max(32 << 20, 2 * buffer_count * tile_bytes + (4 << 20))))

    spec_kwargs = {}
    if buffer_count != 2:                     # optional deeper pipelining knob
        spec_kwargs["pipeline_mode"] = pl.Buffered(buffer_count)

    n = rows * lanes
    cost = pl.CostEstimate(
        flops=n,
        transcendentals=n if kind == "tanh" else 0,
        bytes_accessed=2 * n * itemsize,
    )

    return pl.pallas_call(
        _make_nonlin_kernel(kind),
        out_shape=jax.ShapeDtypeStruct((rows, lanes), x2.dtype),
        grid_spec=pltpu.PrefetchScalarGridSpec(
            num_scalar_prefetch=0,
            grid=grid,
            in_specs=[pl.BlockSpec((tile_rows, lanes), lambda i: (i, 0),
                                   **spec_kwargs)],
            out_specs=pl.BlockSpec((tile_rows, lanes), lambda i: (i, 0),
                                   **spec_kwargs),
        ),
        compiler_params=pltpu.CompilerParams(
            dimension_semantics=("parallel",),     # shards across v7x's 2 TCs
            vmem_limit_bytes=vmem_limit,
        ),
        cost_estimate=cost,
    )(x2)


def non_linearity(x, kind="relu", *, target_block_bytes=4 << 20,
                  min_kernel_bytes=1 << 20, buffer_count=2):
    """Pallas equivalent of _NonLinearity(non_linear)(x).

    Args:
      x: jnp array, any shape (NCHW conv activations, (B, hidden) MLP
         pre-activations, ...).
      kind: 'relu' or 'tanh' (the wrapped non-linear callable).
      target_block_bytes: per-block VMEM budget (~4 MiB: per-step overhead is
         a few % of each step even at v7x's 3.2 TB/s HBM).
      min_kernel_bytes: below this total size, skip the Pallas call and let
         XLA fuse the nonlinearity into the producing op instead.
      buffer_count: BlockSpec pipeline depth (2 = default double-buffering;
         3 hides DMA jitter if a profile shows exposed copies).
    """
    if kind not in ("relu", "tanh"):
        raise ValueError("Non linear function {} is not supported".format(kind))
    # TODO(synk): only relu/tanh are implemented; arbitrary wrapped callables
    # (the generic _NonLinearity contract) have no single Pallas equivalent.

    orig_shape = x.shape
    n = x.size
    itemsize = jnp.dtype(x.dtype).itemsize
    min_sub = _MIN_SUBLANES.get(itemsize, 8)

    # Small-input bypass: a pallas_call is a fusion barrier; for tiny
    # activations launch + DMA setup overhead dominates by >10x.
    if n == 0 or n * itemsize < min_kernel_bytes:
        return _apply_ref(x, kind)

    lanes = _choose_lanes(n, min_sub)
    if lanes is not None:
        # Fast path: exact lane-dense slab, no pad, no trailing slice.
        out2 = _nonlin_slab(x.reshape(n // lanes, lanes), kind, min_sub,
                            target_block_bytes, buffer_count)
        return out2.reshape(orig_shape)

    # n is not a multiple of 128: kernel on the 128-aligned prefix, tiny
    # (<128 element) tail in plain jnp.  No padded copy, no [:n] slice ->
    # HBM traffic stays ~2*n bytes instead of ~6*n.
    n_tail = n % _LANE
    n_main = n - n_tail
    x_flat = x.reshape(-1)
    if n_main == 0:
        return _apply_ref(x, kind)
    main_lanes = _choose_lanes(n_main, min_sub)
    main2 = x_flat[:n_main].reshape(n_main // main_lanes, main_lanes)
    out_main = _nonlin_slab(main2, kind, min_sub,
                            target_block_bytes, buffer_count).reshape(-1)
    out_tail = _apply_ref(x_flat[n_main:], kind)
    return jnp.concatenate([out_main, out_tail]).reshape(orig_shape)


if __name__ == "__main__":
    key = jax.random.PRNGKey(0)
    # Small NCHW input consistent with typical conv activations.
    x = jax.random.normal(key, (2, 4, 16, 16), dtype=jnp.float32)

    # Force the Pallas path for the tests (the default min_kernel_bytes would
    # bypass a tensor this small and hand it to XLA fusion instead).
    kernel = functools.partial(non_linearity, min_kernel_bytes=0)

    # _NonLinearity(nn.ReLU) equivalent — (8, 256) slab, single full block.
    y_relu = jax.block_until_ready(kernel(x, kind="relu"))
    assert y_relu.shape == x.shape and y_relu.dtype == x.dtype
    assert jnp.allclose(y_relu, jnp.maximum(x, 0.0), atol=1e-6)

    # _NonLinearity(torch.tanh) equivalent.
    y_tanh = jax.block_until_ready(kernel(x, kind="tanh"))
    assert jnp.allclose(y_tanh, jnp.tanh(x), atol=1e-5)

    # Non-divisible element count: 128-aligned prefix through the kernel,
    # <128-element tail through jnp (no pad, no trailing slice).
    x_odd = jax.random.normal(jax.random.PRNGKey(1), (3, 5, 67), dtype=jnp.float32)
    y_odd = jax.block_until_ready(kernel(x_odd, kind="relu"))
    assert y_odd.shape == x_odd.shape
    assert jnp.allclose(y_odd, jnp.maximum(x_odd, 0.0), atol=1e-6)

    # bf16 path: dtype-aware sublane tiling (16-row minimum).
    x_bf16 = x.astype(jnp.bfloat16)
    y_bf16 = jax.block_until_ready(kernel(x_bf16, kind="tanh"))
    ref_bf16 = jnp.tanh(x.astype(jnp.float32)).astype(jnp.bfloat16)
    assert y_bf16.dtype == jnp.bfloat16
    assert jnp.allclose(y_bf16.astype(jnp.float32),
                        ref_bf16.astype(jnp.float32), atol=2e-2)

    # Multi-step grid: >=2 blocks so both v7x TensorCores get work.
    x_big = jax.random.normal(jax.random.PRNGKey(2), (256, 1024), dtype=jnp.float32)
    y_big = jax.block_until_ready(kernel(x_big, kind="relu"))
    assert jnp.allclose(y_big, jnp.maximum(x_big, 0.0), atol=1e-6)

    # Default small-input bypass (pure jnp; XLA fuses into the producer).
    y_bypass = jax.block_until_ready(non_linearity(x, kind="relu"))
    assert jnp.allclose(y_bypass, y_relu, atol=1e-6)

    print("KERNEL_OK")
</pallas_src>

<mosaic_0001>
module attributes {stable_mosaic.version = 11 : i64} {
  func.func @kernel(%arg0: i32, %arg1: memref<8x256xf32, #tpu.memory_space<vmem>>, %arg2: memref<8x256xf32, #tpu.memory_space<vmem>>) attributes {dimension_semantics = [#tpu.dimension_semantics<parallel>], iteration_bounds = array<i64: 1>, scalar_prefetch = 0 : i64, scratch_operands = 0 : i64, tpu.core_type = #tpu.core_type<tc>, window_params = [{transform_indices = @transform_0, window_bounds = array<i64: 8, 256>}, {transform_indices = @transform_1, window_bounds = array<i64: 8, 256>}]} {
    %c0 = arith.constant 0 : index
    %c0_0 = arith.constant 0 : index
    %0 = vector.load %arg1[%c0, %c0_0] : memref<8x256xf32, #tpu.memory_space<vmem>>, vector<8x256xf32>
    %cst = arith.constant 0.000000e+00 : f32
    %1 = vector.broadcast %cst : f32 to vector<8x256xf32>
    %2 = arith.maximumf %0, %1 : vector<8x256xf32>
    %c0_1 = arith.constant 0 : index
    %c0_2 = arith.constant 0 : index
    %3 = vector.load %arg2[%c0_1, %c0_2] : memref<8x256xf32, #tpu.memory_space<vmem>>, vector<8x256xf32>
    tpu.vector_store %arg2[%c0_1, %c0_2], %2 {strides = array<i32>} : memref<8x256xf32, #tpu.memory_space<vmem>>, vector<8x256xf32>,
    return
  }
  func.func @transform_0(%arg0: i32) -> (i32, i32) {
    %c0_i32 = arith.constant 0 : i32
    %c0_i32_0 = arith.constant 0 : i32
    return %arg0, %c0_i32 : i32, i32
  }
  func.func @transform_1(%arg0: i32) -> (i32, i32) {
    %c0_i32 = arith.constant 0 : i32
    %c0_i32_0 = arith.constant 0 : i32
    return %arg0, %c0_i32 : i32, i32
  }
}

</mosaic_0001>

<llo_original>
// kernel: tpu_custom_call.1
$region0: #{tpu_custom_call.1}
  #allocation0 [shape = 'u32[]', space=smem, size = 0x4, offset = 0x4, fixed_abs, tag = 'smem constant byte address 0x4 - core index']
  #allocation1 [shape = 'u32[144,128]{1,0:T(1,128)}', space=vmem, size = 0x12000, scoped, tag = 'internal scratch']
  %s0 = inlined_call_operand.hbm [shape: f32[8,256], index: 0, kind: input, shape index: {}]
  %s1 = inlined_call_operand.hbm [shape: f32[8,256], index: 1, kind: output, shape index: {}]
  %s2 = sld [smem:[#allocation0]]
  $region18: #{tpu_custom_call.1} parent=0
    _
  %s4 = ssub.s32 1, %s2
  %s5 = scalar_select 0, %s4, %s2
  $region1: #{tpu_custom_call.1} parent=0
    #allocation2 [shape = 'u8[8192]{0}', space=vmem, size = 0x2000, scoped, tag = 'input window, operand 0, single buffered']
    #allocation3 [shape = 's32[1]{0}', space=sflag, size = 0x4, scoped, tag = 'scoped memory for tpu_custom_call.1']
    #allocation4 [shape = 's32[1]{0}', space=sflag, size = 0x4, scoped, tag = 'scoped memory for tpu_custom_call.1']
    #allocation5 [shape = 'u8[8192]{0}', space=vmem, size = 0x2000, scoped, tag = 'output window, operand 0, single buffered']
    %6 = vsyncpa [#allocation3], 0
    %7 = vsyncpa [#allocation4], 0
    // Predicated region
    $region2: #{tpu_custom_call.1} parent=1 // pred_check
      _
    $region3: #{tpu_custom_call.1} parent=1 // pred_check_branch
      %9 = sbr.rel (0) target = $region5
    $region4: #{tpu_custom_call.1} parent=1 // pred_region
      %s11 = ssub.s32 256, 256
      %12 = vsyncadd [#allocation3], %s11
      %s14 = sshll.u32 [#allocation2], 4
      %s15 = int_to_ptr.vmem [resolvable:$true] %s14
      %17 = dma.hbm_to_vmem [thread:$0]  %s0, 256, %s15, [#allocation3]
    $region5: #{tpu_custom_call.1} parent=1 // pred_fallthru
      _
    // Predicated region
    $region6: #{tpu_custom_call.1} parent=1 // pred_check
      _
    $region7: #{tpu_custom_call.1} parent=1 // pred_check_branch
      %19 = sbr.rel (0) target = $region9
    $region8: #{tpu_custom_call.1} parent=1 // pred_region
      %20 = dma.done [#allocation3], 256
    $region9: #{tpu_custom_call.1} parent=1 // pred_fallthru
      _
    %v21 = vld [vmem:[#allocation2] sm:$0xff]
    %v22 = vld [vmem:[#allocation2 + $0x8] sm:$0xff]
    %v23 = vmax.f32 %v21, 0.0
    %v24 = vmax.f32 %v22, 0.0
    %25 = vst [vmem:[#allocation5] sm:$0xff] %v23
    %26 = vst [vmem:[#allocation5 + $0x8] sm:$0xff] %v24
    // Predicated region
    $region10: #{tpu_custom_call.1} parent=1 // pred_check
      _
    $region11: #{tpu_custom_call.1} parent=1 // pred_check_branch
      %28 = sbr.rel (0) target = $region13
    $region12: #{tpu_custom_call.1} parent=1 // pred_region
      %s30 = ssub.s32 256, 256
      %31 = vsyncadd [#allocation4], %s30
      %s33 = sshll.u32 [#allocation5], 4
      %s34 = int_to_ptr.vmem [resolvable:$true] %s33
      %36 = dma.vmem_to_hbm [thread:$0]  %s34, 256, %s1, [#allocation4]
    $region13: #{tpu_custom_call.1} parent=1 // pred_fallthru
      _
    // Predicated region
    $region14: #{tpu_custom_call.1} parent=1 // pred_check
      _
    $region15: #{tpu_custom_call.1} parent=1 // pred_check_branch
      %38 = sbr.rel (0) target = $region17
    $region16: #{tpu_custom_call.1} parent=1 // pred_region
      %39 = dma.done [#allocation4], 256
    $region17: #{tpu_custom_call.1} parent=1 // pred_fallthru
      _
    %40 = vsyncpa [#allocation3], 1
    %41 = vsyncpa [#allocation4], 1

</llo_original>
